<compile_context>
chip_gen: v7x
topology: tpu7x:2x2x1
jax: 0.10.0
libtpu: 0.0.40
codegen_flags: <defaults>
</compile_context>

<pallas_src>
import functools

import jax
import jax.numpy as jnp
from jax import lax
from jax.experimental import pallas as pl
from jax.experimental.pallas import tpu as pltpu

EPS = 1e-5
_MIB = 1024 * 1024


def _rmsnorm_kernel(x_ref, w_ref, o_ref, *, eps):
    # f32 compute path (required on v5e; also matches the reference upcast).
    x = x_ref[...].astype(jnp.float32)
    # Matches the PyTorch module exactly: sqrt(sum(x*x, -1) + eps)  -- SUM, not mean.
    ssq = jnp.sum(x * x, axis=-1, keepdims=True)
    inv_rms = lax.rsqrt(ssq + eps)               # EUP rsqrt; avoids a VALU divide
    w = w_ref[...].astype(jnp.float32)
    o_ref[...] = (x * inv_rms * w).astype(o_ref.dtype)


def _round_up(x, m):
    return (x + m - 1) // m * m


def _vmem_capacity_bytes():
    try:
        return int(pltpu.get_tpu_info().vmem_capacity_bytes)
    except Exception:
        return 64 * _MIB  # conservative fallback == v7x per-TC VMEM


def rmsnorm_2d(x2d, weight, *, eps=EPS):
    """x2d: (n, d) with d a multiple of 128; weight: (d,)."""
    n, d = x2d.shape
    itemsize = jnp.dtype(x2d.dtype).itemsize
    w_itemsize = jnp.dtype(weight.dtype).itemsize
    sub = 16 if itemsize == 2 else 8  # sublane multiple for packed dtypes

    # ---- per-generation VMEM budget & per-buffer block target -------------
    cap = _vmem_capacity_bytes()
    if cap >= 128 * _MIB:            # v5e / v6e: 128 MiB physical VMEM
        budget, target_block = 56 * _MIB, 8 * _MIB
    else:                            # v7x: 64 MiB per TensorCore
        budget, target_block = 26 * _MIB, 4 * _MIB

    # ---- size the row tile by bytes (not a fixed row count) ---------------
    row_tile = max(sub, target_block // max(1, d * itemsize))
    row_tile = max(sub, _round_up(min(row_tile, n), sub))

    def vmem_bytes(rt):
        tile = rt * d * itemsize
        # bf16/fp8 inputs: the whole-tile f32 cast is live across ssq and the
        # final product -> budget it explicitly (review item).
        f32_tmp = rt * d * 4 if itemsize != 4 else 0
        w_bytes = 2 * d * w_itemsize              # weight row (double-buffered)
        return 2 * tile + 2 * tile + f32_tmp + w_bytes

    while row_tile > sub and vmem_bytes(row_tile) > budget:
        row_tile = max(sub, _round_up(row_tile // 2, sub))

    grid = (pl.cdiv(n, row_tile),)   # tail block handled by masked boundary stores
    kernel = functools.partial(_rmsnorm_kernel, eps=eps)

    vmem_limit = int(min(max(vmem_bytes(row_tile) + 4 * _MIB, 32 * _MIB), cap))

    return pl.pallas_call(
        kernel,
        out_shape=jax.ShapeDtypeStruct((n, d), x2d.dtype),
        grid=grid,
        in_specs=[
            pl.BlockSpec((row_tile, d), lambda i: (i, 0)),
            pl.BlockSpec((1, d), lambda i: (0, 0)),   # constant index -> fetched once
        ],
        out_specs=pl.BlockSpec((row_tile, d), lambda i: (i, 0)),
        compiler_params=pltpu.CompilerParams(
            dimension_semantics=("parallel",),
            vmem_limit_bytes=vmem_limit,
        ),
    )(x2d, weight.reshape(1, d))


def rmsnorm(x, weight, *, eps=EPS):
    """x: (..., d_model) e.g. [batch, seq, d_model]; weight: (d_model,)."""
    d = x.shape[-1]
    x2d = x.reshape(-1, d)
    w = weight

    # Lane-density guard: keep kernel stores unmasked when d % 128 != 0.
    # Zero-padding the feature dim does not change sum(x*x); padded output
    # columns are sliced off afterwards. (No-op for typical d_model.)
    d_pad = _round_up(d, 128)
    if d_pad != d:
        x2d = jnp.pad(x2d, ((0, 0), (0, d_pad - d)))
        w = jnp.pad(weight, (0, d_pad - d))

    out2d = rmsnorm_2d(x2d, w, eps=eps)
    if d_pad != d:
        out2d = out2d[:, :d]
    return out2d.reshape(x.shape)


def _ref_rmsnorm(x, w, eps=EPS):
    xf = x.astype(jnp.float32)
    rms = jnp.sqrt(jnp.sum(xf * xf, axis=-1, keepdims=True) + eps)
    return ((xf / rms) * w.astype(jnp.float32)).astype(x.dtype)


if __name__ == "__main__":
    key = jax.random.PRNGKey(0)
    k1, k2, k3, k4 = jax.random.split(key, 4)

    # Case 1: f32, lane-dense d_model, small canonical shape.
    batch, seq, d_model = 2, 8, 128
    x = jax.random.normal(k1, (batch, seq, d_model), jnp.float32)
    weight = 1.0 + 0.01 * jax.random.normal(k2, (d_model,), jnp.float32)

    out = rmsnorm(x, weight)
    jax.block_until_ready(out)
    ref = _ref_rmsnorm(x, weight)
    assert out.shape == x.shape and out.dtype == x.dtype
    assert jnp.allclose(out, ref, atol=1e-5, rtol=1e-5), \
        float(jnp.max(jnp.abs(out - ref)))

    # Case 2: f32 with a row count that is not a multiple of the sublane tile.
    x_tail = jax.random.normal(k3, (3, 7, d_model), jnp.float32)
    out_tail = rmsnorm(x_tail, weight)
    jax.block_until_ready(out_tail)
    ref_tail = _ref_rmsnorm(x_tail, weight)
    assert jnp.allclose(out_tail, ref_tail, atol=1e-5, rtol=1e-5)

    # Case 3: bf16 input (f32 compute, bf16 store; f32 temp is budgeted).
    x_bf16 = jax.random.normal(k1, (batch, seq, d_model), jnp.float32).astype(jnp.bfloat16)
    out_bf16 = rmsnorm(x_bf16, weight)
    jax.block_until_ready(out_bf16)
    ref_bf16 = _ref_rmsnorm(x_bf16, weight)
    assert out_bf16.dtype == jnp.bfloat16
    assert jnp.allclose(out_bf16.astype(jnp.float32),
                        ref_bf16.astype(jnp.float32), atol=2e-2, rtol=2e-2)

    # Case 4: d_model not a multiple of 128 -> exercises the lane-pad path.
    d_odd = 100
    x_odd = jax.random.normal(k4, (2, 8, d_odd), jnp.float32)
    w_odd = 1.0 + 0.01 * jax.random.normal(k2, (d_odd,), jnp.float32)
    out_odd = rmsnorm(x_odd, w_odd)
    jax.block_until_ready(out_odd)
    ref_odd = _ref_rmsnorm(x_odd, w_odd)
    assert out_odd.shape == x_odd.shape
    assert jnp.allclose(out_odd, ref_odd, atol=1e-5, rtol=1e-5)

    print("KERNEL_OK")
</pallas_src>

<mosaic_0001>
module attributes {stable_mosaic.version = 11 : i64} {
  func.func @_rmsnorm_kernel(%arg0: i32, %arg1: memref<16x128xf32, #tpu.memory_space<vmem>>, %arg2: memref<1x128xf32, #tpu.memory_space<vmem>>, %arg3: memref<16x128xf32, #tpu.memory_space<vmem>>) attributes {dimension_semantics = [#tpu.dimension_semantics<parallel>], iteration_bounds = array<i64: 1>, scalar_prefetch = 0 : i64, scratch_operands = 0 : i64, tpu.core_type = #tpu.core_type<tc>, window_params = [{transform_indices = @transform_0, window_bounds = array<i64: 16, 128>}, {pipeline_mode = #tpu.pipeline_mode<synchronous>, transform_indices = @transform_1, window_bounds = array<i64: 1, 128>}, {transform_indices = @transform_2, window_bounds = array<i64: 16, 128>}]} {
    %c0 = arith.constant 0 : index
    %c0_0 = arith.constant 0 : index
    %0 = vector.load %arg1[%c0, %c0_0] : memref<16x128xf32, #tpu.memory_space<vmem>>, vector<16x128xf32>
    %1 = arith.mulf %0, %0 : vector<16x128xf32>
    %cst = arith.constant dense<0.000000e+00> : vector<16xf32>
    %2 = vector.multi_reduction <add>, %1, %cst [1] : vector<16x128xf32> to vector<16xf32>
    %3 = vector.shape_cast %2 : vector<16xf32> to vector<16x1xf32>
    %cst_1 = arith.constant 9.99999974E-6 : f32
    %4 = vector.broadcast %cst_1 : f32 to vector<16x1xf32>
    %5 = arith.addf %3, %4 : vector<16x1xf32>
    %6 = math.rsqrt %5 : vector<16x1xf32>
    %c0_2 = arith.constant 0 : index
    %c0_3 = arith.constant 0 : index
    %7 = vector.load %arg2[%c0_2, %c0_3] : memref<1x128xf32, #tpu.memory_space<vmem>>, vector<1x128xf32>
    %8 = vector.broadcast %6 : vector<16x1xf32> to vector<16x128xf32>
    %9 = arith.mulf %0, %8 : vector<16x128xf32>
    %10 = vector.broadcast %7 : vector<1x128xf32> to vector<16x128xf32>
    %11 = arith.mulf %9, %10 : vector<16x128xf32>
    %c0_4 = arith.constant 0 : index
    %c0_5 = arith.constant 0 : index
    %12 = vector.load %arg3[%c0_4, %c0_5] : memref<16x128xf32, #tpu.memory_space<vmem>>, vector<16x128xf32>
    tpu.vector_store %arg3[%c0_4, %c0_5], %11 {strides = array<i32>} : memref<16x128xf32, #tpu.memory_space<vmem>>, vector<16x128xf32>,
    return
  }
  func.func @transform_0(%arg0: i32) -> (i32, i32) {
    %c0_i32 = arith.constant 0 : i32
    %c0_i32_0 = arith.constant 0 : i32
    return %arg0, %c0_i32 : i32, i32
  }
  func.func @transform_1(%arg0: i32) -> (i32, i32) {
    %c0_i32 = arith.constant 0 : i32
    %c0_i32_0 = arith.constant 0 : i32
    %c0_i32_1 = arith.constant 0 : i32
    return %c0_i32, %c0_i32_0 : i32, i32
  }
  func.func @transform_2(%arg0: i32) -> (i32, i32) {
    %c0_i32 = arith.constant 0 : i32
    %c0_i32_0 = arith.constant 0 : i32
    return %arg0, %c0_i32 : i32, i32
  }
}

</mosaic_0001>

<llo_original>
// kernel: tpu_custom_call.1
$region0: #{tpu_custom_call.1}
  #allocation0 [shape = 'u32[]', space=smem, size = 0x4, offset = 0x4, fixed_abs, tag = 'smem constant byte address 0x4 - core index']
  #allocation1 [shape = 'u32[144,128]{1,0:T(1,128)}', space=vmem, size = 0x12000, scoped, tag = 'internal scratch']
  %s0 = inlined_call_operand.hbm [shape: f32[16,128], index: 0, kind: input, shape index: {}]
  %s1 = inlined_call_operand.vmem [shape: f32[1,128], index: 1, kind: input, shape index: {}]
  %s2 = inlined_call_operand.hbm [shape: f32[16,128], index: 2, kind: output, shape index: {}]
  %s3 = sld [smem:[#allocation0]]
  $region22: #{tpu_custom_call.1} parent=0
    _
  %s5 = ssub.s32 1, %s3
  %s6 = scalar_select 0, %s5, %s3
  $region1: #{tpu_custom_call.1} parent=0
    #allocation2 [shape = 'u8[8192]{0}', space=vmem, size = 0x2000, scoped, tag = 'input window, operand 0, single buffered']
    #allocation3 [shape = 's32[1]{0}', space=sflag, size = 0x4, scoped, tag = 'scoped memory for tpu_custom_call.1']
    #allocation4 [shape = 's32[1]{0}', space=sflag, size = 0x4, scoped, tag = 'scoped memory for tpu_custom_call.1']
    #allocation5 [shape = 'u8[8192]{0}', space=vmem, size = 0x2000, scoped, tag = 'output window, operand 0, single buffered']
    %7 = vsyncpa [#allocation3], 0
    %8 = vsyncpa [#allocation4], 0
    // Predicated region
    $region2: #{tpu_custom_call.1} parent=1 // pred_check
      _
    $region3: #{tpu_custom_call.1} parent=1 // pred_check_branch
      %10 = sbr.rel (0) target = $region5
    $region4: #{tpu_custom_call.1} parent=1 // pred_region
      %s12 = ssub.s32 256, 256
      %13 = vsyncadd [#allocation3], %s12
      %s14 = sshll.u32 [#allocation2], 4
      %s15 = int_to_ptr.vmem [resolvable:$true] %s14
      %20 = dma.hbm_to_vmem [thread:$0]  %s0, 256, %s15, [#allocation3], 128, 128, 8
    $region5: #{tpu_custom_call.1} parent=1 // pred_fallthru
      _
    // Predicated region
    $region6: #{tpu_custom_call.1} parent=1 // pred_check
      _
    $region7: #{tpu_custom_call.1} parent=1 // pred_check_branch
      %22 = sbr.rel (0) target = $region9
    $region8: #{tpu_custom_call.1} parent=1 // pred_region
      _
    $region9: #{tpu_custom_call.1} parent=1 // pred_fallthru
      _
    // Predicated region
    $region10: #{tpu_custom_call.1} parent=1 // pred_check
      _
    $region11: #{tpu_custom_call.1} parent=1 // pred_check_branch
      %24 = sbr.rel (0) target = $region13
    $region12: #{tpu_custom_call.1} parent=1 // pred_region
      %25 = dma.done [#allocation3], 256
    $region13: #{tpu_custom_call.1} parent=1 // pred_fallthru
      _
    %v26 = vld [vmem:[#allocation2] sm:$0xff]
    %v27 = vld [vmem:[#allocation2 + $0x8] sm:$0xff]
    %v28 = vmul.f32 %v26, %v26
    %v29 = vmul.f32 %v27, %v27
    %30 = vadd.xlane.f32.xlu0 %v28
    %v31 = vpop.xlane.xlu0 %30
    %32 = vadd.xlane.f32.xlu0 %v29
    %v33 = vpop.xlane.xlu0 %32
    %v34 = vadd.f32 %v31, 1e-05
    %v35 = vadd.f32 %v33, 1e-05
    %v36 = vrsqrt.pop %v34
    %v37 = vrsqrt.pop %v35
    %v38 = vld [vmem:[%s1] sm:$0x1]
    %v39 = vmul.f32 %v26, %v36
    %v40 = vmul.f32 %v27, %v37
    %v42 = vlaneseq
    %v43 = vshrl.u32 %v42, 7
    %v44 = vsub.s32 0, %v43
    %v45 = vrot.slane %v38, %v44
    %v47 = vmul.f32 %v39, %v45
    %v48 = vmul.f32 %v40, %v45
    %49 = vst [vmem:[#allocation5] sm:$0xff] %v47
    %50 = vst [vmem:[#allocation5 + $0x8] sm:$0xff] %v48
    // Predicated region
    $region14: #{tpu_custom_call.1} parent=1 // pred_check
      _
    $region15: #{tpu_custom_call.1} parent=1 // pred_check_branch
      %52 = sbr.rel (0) target = $region17
    $region16: #{tpu_custom_call.1} parent=1 // pred_region
      %s54 = ssub.s32 256, 256
      %55 = vsyncadd [#allocation4], %s54
      %s56 = sshll.u32 [#allocation5], 4
      %s57 = int_to_ptr.vmem [resolvable:$true] %s56
      %62 = dma.vmem_to_hbm [thread:$0]  %s57, 256, %s2, [#allocation4], 128, 128, 8
    $region17: #{tpu_custom_call.1} parent=1 // pred_fallthru
      _
    // Predicated region
    $region18: #{tpu_custom_call.1} parent=1 // pred_check
      _
    $region19: #{tpu_custom_call.1} parent=1 // pred_check_branch
      %64 = sbr.rel (0) target = $region21
    $region20: #{tpu_custom_call.1} parent=1 // pred_region
      %65 = dma.done [#allocation4], 256
    $region21: #{tpu_custom_call.1} parent=1 // pred_fallthru
      _
    %66 = vsyncpa [#allocation3], 1
    %67 = vsyncpa [#allocation4], 1

</llo_original>
